<compile_context>
chip_gen: v5e
topology: v5e:2x2
jax: 0.10.0
libtpu: 0.0.40
codegen_flags: <defaults>
</compile_context>

<pallas_src>
import jax
import jax.numpy as jnp
from jax.experimental import pallas as pl
from jax.experimental.pallas import tpu as pltpu


def _round_up(x, m):
    return ((x + m - 1) // m) * m


def _pick_tm(B, tm_max):
    """Batch tile: multiple of 8; aim for >=2 tiles once B >= 32 so the
    'parallel' batch axis can shard across both v7x TensorCores."""
    B8 = _round_up(B, 8)
    if B8 >= 32:
        tm = min(tm_max, _round_up((B8 + 1) // 2, 8))
    else:
        tm = min(tm_max, B8)
    return max(8, tm)


def _pick_tk(D_pad, tk_max):
    """Largest multiple of 128 that divides D_pad (itself a multiple of 128)
    and is <= tk_max -- avoids over-padding D up to a multiple of the tile."""
    if D_pad <= tk_max:
        return D_pad
    n_chunks = D_pad // 128
    best, m = 128, 1
    while 128 * m <= tk_max:
        if n_chunks % m == 0:
            best = 128 * m
        m += 1
    return best


# --------------------------------------------------------------------------
# Kernels
# --------------------------------------------------------------------------
def _resident_kernel(temp_ref, x_ref, w_ref, b_ref, o_ref):
    # Whole weight resident in VMEM: one dot, bias add, 1/T scale, store.
    # temp_ref: SMEM (1,)        f32 temperature
    # x_ref:    VMEM (tm, D_pad) native dtype (cast to bf16 here; VPU has slack)
    # w_ref:    VMEM (D_pad, C)  bf16 full weight
    # b_ref:    VMEM (1, C)      f32 bias
    # o_ref:    VMEM (tm, C)     f32 output tile
    inv_t = 1.0 / temp_ref[0]
    x = x_ref[...].astype(jnp.bfloat16)
    acc = jnp.dot(x, w_ref[...], preferred_element_type=jnp.float32)
    o_ref[...] = ((acc + b_ref[...]) * inv_t).astype(o_ref.dtype)


def _tiled_kernel(temp_ref, x_ref, w_ref, b_ref, o_ref, acc_ref):
    # Tiled (batch, reduction) fallback with a persistent f32 accumulator.
    k = pl.program_id(1)
    x = x_ref[...].astype(jnp.bfloat16)
    partial = jnp.dot(x, w_ref[...], preferred_element_type=jnp.float32)

    @pl.when(k == 0)
    def _():
        acc_ref[...] = partial          # init with first partial: no zero pass

    @pl.when(k > 0)
    def _():
        acc_ref[...] += partial

    @pl.when(k == pl.num_programs(1) - 1)
    def _():
        inv_t = 1.0 / temp_ref[0]
        o_ref[...] = ((acc_ref[...] + b_ref[...]) * inv_t).astype(o_ref.dtype)


# --------------------------------------------------------------------------
# Wrapper
# --------------------------------------------------------------------------
def prepare_params(w, b):
    """One-time weight/bias preparation (cast + pad). Call once and reuse the
    result across forwards so steady-state HBM traffic is just the prepared
    bf16 weight."""
    D, C = w.shape
    D_pad = _round_up(D, 128)
    # Only pad the class dim when it is already >= 128; tiny class counts stay
    # unpadded (full-array last-dim blocks are legal, masked stores are cheap).
    C_out = C if C < 128 else _round_up(C, 128)
    w_p = w.astype(jnp.bfloat16)
    if D_pad != D or C_out != C:
        w_p = jnp.pad(w_p, ((0, D_pad - D), (0, C_out - C)))
    b_p = b.astype(jnp.float32).reshape(1, C)
    if C_out != C:
        b_p = jnp.pad(b_p, ((0, 0), (0, C_out - C)))
    return {"w": w_p, "b": b_p, "D": D, "C": C}


def temperature_scaled_forward(x_nchw, params, temperature, *,
                               tm_max=512, tk_max=2048):
    """Equivalent of TemperatureScaledModel(model=Linear)(x) = (x @ W + b) / T."""
    w_p, b_p = params["w"], params["b"]
    D, C = params["D"], params["C"]
    D_pad, C_out = w_p.shape
    B = x_nchw.shape[0]
    x_flat = x_nchw.reshape(B, D)                 # matches torch .view(B, -1)

    tm = _pick_tm(B, tm_max)
    B_pad = _round_up(B, tm)
    x_itemsize = max(2, x_flat.dtype.itemsize)    # conservative (>= bf16)

    # --- fast path: whole weight resident in VMEM --------------------------
    resident_foot = (2 * tm * D_pad * x_itemsize          # x (double-buffered)
                     + 2 * D_pad * C_out * 2              # weight (2x, safe)
                     + 2 * tm * C_out * 4                 # output
                     + 2 * C_out * 4)                     # bias
    resident = resident_foot <= (12 << 20)

    if resident:
        tk = D_pad
    else:
        # TODO(synk): add an N (class) grid axis for very large class counts.
        tk = _pick_tk(D_pad, tk_max)
        def _foot(tm_, tk_):
            return (2 * (tm_ * tk_ * x_itemsize + tk_ * C_out * 2)
                    + 3 * tm_ * C_out * 4 + 2 * C_out * 4)
        while tk > 128 and _foot(tm, tk) > (12 << 20):
            tk = _pick_tk(D_pad, tk // 2)
        while tm > 8 and _foot(tm, tk) > (12 << 20):
            tm = max(8, tm // 2)
        B_pad = _round_up(B, tm)

    # --- activation prep: pad only when needed ------------------------------
    if B_pad != B or D_pad != D:
        x_in = jnp.pad(x_flat.astype(jnp.bfloat16),
                       ((0, B_pad - B), (0, D_pad - D)))
    else:
        x_in = x_flat                      # native dtype; cast in-kernel

    temp = jnp.asarray(temperature, jnp.float32).reshape(1)

    if resident:
        grid = (B_pad // tm,)
        kernel = _resident_kernel
        in_specs = [
            pl.BlockSpec(memory_space=pltpu.MemorySpace.SMEM),   # temperature
            pl.BlockSpec((tm, D_pad), lambda i: (i, 0)),         # x tile
            pl.BlockSpec((D_pad, C_out), lambda i: (0, 0)),      # whole weight
            pl.BlockSpec((1, C_out), lambda i: (0, 0)),          # bias
        ]
        out_specs = pl.BlockSpec((tm, C_out), lambda i: (i, 0))
        scratch_shapes = []
        dim_sem = ("parallel",)
        footprint = resident_foot
    else:
        grid = (B_pad // tm, D_pad // tk)
        kernel = _tiled_kernel
        in_specs = [
            pl.BlockSpec(memory_space=pltpu.MemorySpace.SMEM),   # temperature
            pl.BlockSpec((tm, tk), lambda i, k: (i, k)),         # x tile
            pl.BlockSpec((tk, C_out), lambda i, k: (k, 0)),      # w tile
            pl.BlockSpec((1, C_out), lambda i, k: (0, 0)),       # bias
        ]
        out_specs = pl.BlockSpec((tm, C_out), lambda i, k: (i, 0))
        scratch_shapes = [pltpu.VMEM((tm, C_out), jnp.float32)]
        dim_sem = ("parallel", "arbitrary")
        footprint = (2 * (tm * tk * x_in.dtype.itemsize + tk * C_out * 2)
                     + 3 * tm * C_out * 4 + 2 * C_out * 4)

    # Raise the scoped-VMEM limit beyond the 16/32 MiB defaults when larger
    # tiles need it; cap at 40 MiB (safe on v7x's 64 MiB physical VMEM).
    vmem_limit = int(min(40 << 20, max(32 << 20, 2 * footprint)))

    cost = pl.CostEstimate(
        flops=2 * B_pad * D_pad * C_out,
        transcendentals=0,
        bytes_accessed=(x_in.size * x_in.dtype.itemsize
                        + w_p.size * 2 + b_p.size * 4 + B_pad * C_out * 4),
    )

    out = pl.pallas_call(
        kernel,
        out_shape=jax.ShapeDtypeStruct((B_pad, C_out), jnp.float32),
        grid_spec=pltpu.PrefetchScalarGridSpec(
            num_scalar_prefetch=0,
            grid=grid,
            in_specs=in_specs,
            out_specs=out_specs,
            scratch_shapes=scratch_shapes,
        ),
        compiler_params=pltpu.CompilerParams(
            dimension_semantics=dim_sem,
            vmem_limit_bytes=vmem_limit),
        cost_estimate=cost,
    )(temp, x_in, w_p, b_p)

    if B_pad != B or C_out != C:
        out = out[:B, :C]
    return out


if __name__ == "__main__":
    # Small, deterministic example shapes (NCHW input, like the torch module).
    B, Cin, H, W = 8, 4, 16, 16
    D = Cin * H * W                     # 1024 flattened features
    NUM_CLASSES = 16
    TEMP_INIT = 1.5                     # module default is temp_init=1; any scalar works

    key = jax.random.PRNGKey(0)
    kx, kw, kb = jax.random.split(key, 3)
    x = jax.random.normal(kx, (B, Cin, H, W), dtype=jnp.float32)
    w = jax.random.normal(kw, (D, NUM_CLASSES), dtype=jnp.float32) * 0.02
    b = jax.random.normal(kb, (NUM_CLASSES,), dtype=jnp.float32) * 0.01
    temperature = jnp.array([TEMP_INIT], dtype=jnp.float32)

    # Weight prep hoisted out of the forward (cache across calls).
    params = prepare_params(w, b)

    out = temperature_scaled_forward(x, params, temperature)
    out = jax.block_until_ready(out)
    assert out.shape == (B, NUM_CLASSES)

    # Reference with the same bf16 rounding of x and W (accumulation stays f32).
    x_bf = x.reshape(B, D).astype(jnp.bfloat16).astype(jnp.float32)
    w_bf = w.astype(jnp.bfloat16).astype(jnp.float32)
    ref_bf16 = (x_bf @ w_bf + b[None, :]) / temperature[0]
    assert jnp.allclose(out, ref_bf16, atol=2e-3, rtol=2e-3), "mismatch vs bf16 reference"

    # Loose sanity check against the pure-f32 reference (bf16 rounding only).
    ref_f32 = (x.reshape(B, D) @ w + b[None, :]) / temperature[0]
    assert jnp.allclose(out, ref_f32, atol=2e-2, rtol=2e-2), "bf16 drift too large"

    # TODO(synk): TemperatureScaledModel.fit() (LBFGS temperature calibration)
    # is a training-time loop, not part of forward; intentionally not ported.
    print("KERNEL_OK")
</pallas_src>

<mosaic_0001>
module attributes {stable_mosaic.version = 11 : i64} {
  func.func @_resident_kernel(%arg0: i32, %arg1: memref<1xf32, #tpu.memory_space<smem>>, %arg2: memref<8x1024xf32, #tpu.memory_space<vmem>>, %arg3: memref<1024x16xbf16, #tpu.memory_space<vmem>>, %arg4: memref<1x16xf32, #tpu.memory_space<vmem>>, %arg5: memref<8x16xf32, #tpu.memory_space<vmem>>) attributes {dimension_semantics = [#tpu.dimension_semantics<parallel>], iteration_bounds = array<i64: 1>, scalar_prefetch = 0 : i64, scratch_operands = 0 : i64, tpu.core_type = #tpu.core_type<tc>, window_params = [{transform_indices = @transform_0, window_bounds = array<i64: 1>}, {transform_indices = @transform_1, window_bounds = array<i64: 8, 1024>}, {pipeline_mode = #tpu.pipeline_mode<synchronous>, transform_indices = @transform_2, window_bounds = array<i64: 1024, 16>}, {pipeline_mode = #tpu.pipeline_mode<synchronous>, transform_indices = @transform_3, window_bounds = array<i64: 1, 16>}, {transform_indices = @transform_4, window_bounds = array<i64: 8, 16>}]} {
    %c0 = arith.constant 0 : index
    %0 = memref.load %arg1[%c0] : memref<1xf32, #tpu.memory_space<smem>>
    %cst = arith.constant 1.000000e+00 : f32
    %1 = arith.divf %cst, %0 : f32
    %c0_0 = arith.constant 0 : index
    %c0_1 = arith.constant 0 : index
    %2 = vector.load %arg2[%c0_0, %c0_1] : memref<8x1024xf32, #tpu.memory_space<vmem>>, vector<8x1024xf32>
    %3 = arith.truncf %2 : vector<8x1024xf32> to vector<8x1024xbf16>
    %c0_2 = arith.constant 0 : index
    %c0_3 = arith.constant 0 : index
    %4 = vector.load %arg3[%c0_2, %c0_3] : memref<1024x16xbf16, #tpu.memory_space<vmem>>, vector<1024x16xbf16>
    %cst_4 = arith.constant dense<0.000000e+00> : vector<8x16xf32>
    %5 = tpu.matmul %3, %4, %cst_4 {dimension_numbers = #tpu.dot_dimension_numbers<[1], [0], [0], [1], [0, 0, 1, 1], [], []>} : vector<8x1024xbf16>, vector<1024x16xbf16>, vector<8x16xf32> -> vector<8x16xf32>
    %c0_5 = arith.constant 0 : index
    %c0_6 = arith.constant 0 : index
    %6 = vector.load %arg4[%c0_5, %c0_6] : memref<1x16xf32, #tpu.memory_space<vmem>>, vector<1x16xf32>
    %7 = vector.broadcast %6 : vector<1x16xf32> to vector<8x16xf32>
    %8 = arith.addf %5, %7 : vector<8x16xf32>
    %9 = vector.broadcast %1 : f32 to vector<8x16xf32>
    %10 = arith.mulf %8, %9 : vector<8x16xf32>
    %c0_7 = arith.constant 0 : index
    %c0_8 = arith.constant 0 : index
    %11 = vector.load %arg5[%c0_7, %c0_8] : memref<8x16xf32, #tpu.memory_space<vmem>>, vector<8x16xf32>
    tpu.vector_store %arg5[%c0_7, %c0_8], %10 {strides = array<i32>} : memref<8x16xf32, #tpu.memory_space<vmem>>, vector<8x16xf32>,
    return
  }
  func.func @transform_0(%arg0: i32) -> i32 {
    %c0_i32 = arith.constant 0 : i32
    %c0_i32_0 = arith.constant 0 : i32
    return %c0_i32 : i32
  }
  func.func @transform_1(%arg0: i32) -> (i32, i32) {
    %c0_i32 = arith.constant 0 : i32
    %c0_i32_0 = arith.constant 0 : i32
    return %arg0, %c0_i32 : i32, i32
  }
  func.func @transform_2(%arg0: i32) -> (i32, i32) {
    %c0_i32 = arith.constant 0 : i32
    %c0_i32_0 = arith.constant 0 : i32
    %c0_i32_1 = arith.constant 0 : i32
    return %c0_i32, %c0_i32_0 : i32, i32
  }
  func.func @transform_3(%arg0: i32) -> (i32, i32) {
    %c0_i32 = arith.constant 0 : i32
    %c0_i32_0 = arith.constant 0 : i32
    %c0_i32_1 = arith.constant 0 : i32
    return %c0_i32, %c0_i32_0 : i32, i32
  }
  func.func @transform_4(%arg0: i32) -> (i32, i32) {
    %c0_i32 = arith.constant 0 : i32
    %c0_i32_0 = arith.constant 0 : i32
    return %arg0, %c0_i32 : i32, i32
  }
}

</mosaic_0001>

<llo_original>
// kernel: tpu_custom_call.1
$region0: #{tpu_custom_call.1}
  #allocation0 [shape = 'u32[]', space=smem, size = 0x4, offset = 0x4, fixed_abs, tag = 'smem constant byte address 0x4 - core index']
  #allocation1 [shape = 'u32[72,128]{1,0:T(1,128)}', space=vmem, size = 0x9000, scoped, tag = 'internal scratch']
  #allocation2 [shape = 'f32[1]{0:T(128)S(6)}', space=smem, size = 0x200, scoped, tag = 'scoped memory for tpu_custom_call.1']
  %s0 = inlined_call_operand.<no memory space> [shape: f32[1], index: 0, kind: input, shape index: {}]
  %s1 = inlined_call_operand.vmem [shape: f32[8,1024], index: 1, kind: input, shape index: {}]
  %s2 = inlined_call_operand.vmem [shape: bf16[1024,16], index: 2, kind: input, shape index: {}]
  %s3 = inlined_call_operand.vmem [shape: f32[1,16], index: 3, kind: input, shape index: {}]
  %s4 = inlined_call_operand.hbm [shape: f32[8,16], index: 4, kind: output, shape index: {}]
  %s5 = sld [smem:[#allocation0]]
  $region26: #{tpu_custom_call.1} parent=0
    _
  %s7 = ssub.s32 1, %s5
  %s8 = scalar_select 0, %s7, %s5
  %9 = sst [smem:[#allocation2]] %s0
  $region1: #{tpu_custom_call.1} parent=0
    #allocation3 [shape = 'u8[4096]{0}', space=vmem, size = 0x1000, scoped, tag = 'output window, operand 0, single buffered']
    #allocation4 [shape = 's32[1]{0}', space=sflag, size = 0x4, scoped, tag = 'scoped memory for tpu_custom_call.1']
    %10 = vsyncpa [#allocation4], 0
    // Predicated region
    $region2: #{tpu_custom_call.1} parent=1 // pred_check
      _
    $region3: #{tpu_custom_call.1} parent=1 // pred_check_branch
      %12 = sbr.rel (0) target = $region5
    $region4: #{tpu_custom_call.1} parent=1 // pred_region
      _
    $region5: #{tpu_custom_call.1} parent=1 // pred_fallthru
      _
    // Predicated region
    $region6: #{tpu_custom_call.1} parent=1 // pred_check
      _
    $region7: #{tpu_custom_call.1} parent=1 // pred_check_branch
      %14 = sbr.rel (0) target = $region9
    $region8: #{tpu_custom_call.1} parent=1 // pred_region
      _
    $region9: #{tpu_custom_call.1} parent=1 // pred_fallthru
      _
    // Predicated region
    $region10: #{tpu_custom_call.1} parent=1 // pred_check
      _
    $region11: #{tpu_custom_call.1} parent=1 // pred_check_branch
      %16 = sbr.rel (0) target = $region13
    $region12: #{tpu_custom_call.1} parent=1 // pred_region
      _
    $region13: #{tpu_custom_call.1} parent=1 // pred_fallthru
      _
    // Predicated region
    $region14: #{tpu_custom_call.1} parent=1 // pred_check
      _
    $region15: #{tpu_custom_call.1} parent=1 // pred_check_branch
      %18 = sbr.rel (0) target = $region17
    $region16: #{tpu_custom_call.1} parent=1 // pred_region
      _
    $region17: #{tpu_custom_call.1} parent=1 // pred_fallthru
      _
    %s19 = sld [smem:[#allocation2]]
    %v20 = vstv %s19
    %v21 = vrcp.pop %v20
    %v22 = vmul.f32 %v20, %v21
    %v23 = vsub.f32 1.0, %v22
    %v24 = vmul.f32 %v21, %v23
    %v25 = vadd.f32 %v21, %v24
    %vm26 = vweird.f32 %v20
    %vm27 = vweird.f32 %v21
    %vm28 = vmor %vm26, %vm27
    %v29 = vsel %vm28, %v21, %v25
    %v30 = vand.u32 2147483647, %v20
    %vm31 = vcmp.eq.f32.partialorder %v30, 8.507059e+37
    %v32 = vand.u32 %v20, 2147483648
    %v33 = vor.u32 1.1754944e-38, %v32
    %v34 = vsel %vm31, %v33, %v29
    %s35 = vtos %v34
    %v36 = vld [vmem:[%s1] sm:$0xff]
    %v37 = vld [vmem:[%s1 + $0x8] sm:$0xff]
    %v38 = vld [vmem:[%s1 + $0x10] sm:$0xff]
    %v39 = vld [vmem:[%s1 + $0x18] sm:$0xff]
    %v40 = vld [vmem:[%s1 + $0x20] sm:$0xff]
    %v41 = vld [vmem:[%s1 + $0x28] sm:$0xff]
    %v42 = vld [vmem:[%s1 + $0x30] sm:$0xff]
    %v43 = vld [vmem:[%s1 + $0x38] sm:$0xff]
    %v44 = vpack.c.bf16 %v36, %v36
    %v45 = vpack.c.bf16 %v37, %v37
    %v46 = vpack.c.bf16 %v38, %v38
    %v47 = vpack.c.bf16 %v39, %v39
    %v48 = vpack.c.bf16 %v40, %v40
    %v49 = vpack.c.bf16 %v41, %v41
    %v50 = vpack.c.bf16 %v42, %v42
    %v51 = vpack.c.bf16 %v43, %v43
    %v52 = vld [vmem:[%s2] sm:$0xf]
    %v53 = vld [vmem:[%s2 + $0x4] sm:$0xf]
    %v54 = vld [vmem:[%s2 + $0x8] sm:$0xf]
    %v55 = vld [vmem:[%s2 + $0xc] sm:$0xf]
    %v56 = vld [vmem:[%s2 + $0x10] sm:$0xf]
    %v57 = vld [vmem:[%s2 + $0x14] sm:$0xf]
    %v58 = vld [vmem:[%s2 + $0x18] sm:$0xf]
    %v59 = vld [vmem:[%s2 + $0x1c] sm:$0xf]
    %v60 = vld [vmem:[%s2 + $0x20] sm:$0xf]
    %v61 = vld [vmem:[%s2 + $0x24] sm:$0xf]
    %v62 = vld [vmem:[%s2 + $0x28] sm:$0xf]
    %v63 = vld [vmem:[%s2 + $0x2c] sm:$0xf]
    %v64 = vld [vmem:[%s2 + $0x30] sm:$0xf]
    %v65 = vld [vmem:[%s2 + $0x34] sm:$0xf]
    %v66 = vld [vmem:[%s2 + $0x38] sm:$0xf]
    %v67 = vld [vmem:[%s2 + $0x3c] sm:$0xf]
    %v68 = vld [vmem:[%s2 + $0x40] sm:$0xf]
    %v69 = vld [vmem:[%s2 + $0x44] sm:$0xf]
    %v70 = vld [vmem:[%s2 + $0x48] sm:$0xf]
    %v71 = vld [vmem:[%s2 + $0x4c] sm:$0xf]
    %v72 = vld [vmem:[%s2 + $0x50] sm:$0xf]
    %v73 = vld [vmem:[%s2 + $0x54] sm:$0xf]
    %v74 = vld [vmem:[%s2 + $0x58] sm:$0xf]
    %v75 = vld [vmem:[%s2 + $0x5c] sm:$0xf]
    %v76 = vld [vmem:[%s2 + $0x60] sm:$0xf]
    %v77 = vld [vmem:[%s2 + $0x64] sm:$0xf]
    %v78 = vld [vmem:[%s2 + $0x68] sm:$0xf]
    %v79 = vld [vmem:[%s2 + $0x6c] sm:$0xf]
    %v80 = vld [vmem:[%s2 + $0x70] sm:$0xf]
    %v81 = vld [vmem:[%s2 + $0x74] sm:$0xf]
    %v82 = vld [vmem:[%s2 + $0x78] sm:$0xf]
    %v83 = vld [vmem:[%s2 + $0x7c] sm:$0xf]
    %v84 = vld [vmem:[%s2 + $0x80] sm:$0xf]
    %v85 = vld [vmem:[%s2 + $0x84] sm:$0xf]
    %v86 = vld [vmem:[%s2 + $0x88] sm:$0xf]
    %v87 = vld [vmem:[%s2 + $0x8c] sm:$0xf]
    %v88 = vld [vmem:[%s2 + $0x90] sm:$0xf]
    %v89 = vld [vmem:[%s2 + $0x94] sm:$0xf]
    %v90 = vld [vmem:[%s2 + $0x98] sm:$0xf]
    %v91 = vld [vmem:[%s2 + $0x9c] sm:$0xf]
    %v92 = vld [vmem:[%s2 + $0xa0] sm:$0xf]
    %v93 = vld [vmem:[%s2 + $0xa4] sm:$0xf]
    %v94 = vld [vmem:[%s2 + $0xa8] sm:$0xf]
    %v95 = vld [vmem:[%s2 + $0xac] sm:$0xf]
    %v96 = vld [vmem:[%s2 + $0xb0] sm:$0xf]
    %v97 = vld [vmem:[%s2 + $0xb4] sm:$0xf]
    %v98 = vld [vmem:[%s2 + $0xb8] sm:$0xf]
    %v99 = vld [vmem:[%s2 + $0xbc] sm:$0xf]
    %v100 = vld [vmem:[%s2 + $0xc0] sm:$0xf]
    %v101 = vld [vmem:[%s2 + $0xc4] sm:$0xf]
    %v102 = vld [vmem:[%s2 + $0xc8] sm:$0xf]
    %v103 = vld [vmem:[%s2 + $0xcc] sm:$0xf]
    %v104 = vld [vmem:[%s2 + $0xd0] sm:$0xf]
    %v105 = vld [vmem:[%s2 + $0xd4] sm:$0xf]
    %v106 = vld [vmem:[%s2 + $0xd8] sm:$0xf]
    %v107 = vld [vmem:[%s2 + $0xdc] sm:$0xf]
    %v108 = vld [vmem:[%s2 + $0xe0] sm:$0xf]
    %v109 = vld [vmem:[%s2 + $0xe4] sm:$0xf]
    %v110 = vld [vmem:[%s2 + $0xe8] sm:$0xf]
    %v111 = vld [vmem:[%s2 + $0xec] sm:$0xf]
    %v112 = vld [vmem:[%s2 + $0xf0] sm:$0xf]
    %v113 = vld [vmem:[%s2 + $0xf4] sm:$0xf]
    %v114 = vld [vmem:[%s2 + $0xf8] sm:$0xf]
    %v115 = vld [vmem:[%s2 + $0xfc] sm:$0xf]
    %v116 = vld [vmem:[%s2 + $0x100] sm:$0xf]
    %v117 = vld [vmem:[%s2 + $0x104] sm:$0xf]
    %v118 = vld [vmem:[%s2 + $0x108] sm:$0xf]
    %v119 = vld [vmem:[%s2 + $0x10c] sm:$0xf]
    %v120 = vld [vmem:[%s2 + $0x110] sm:$0xf]
    %v121 = vld [vmem:[%s2 + $0x114] sm:$0xf]
    %v122 = vld [vmem:[%s2 + $0x118] sm:$0xf]
    %v123 = vld [vmem:[%s2 + $0x11c] sm:$0xf]
    %v124 = vld [vmem:[%s2 + $0x120] sm:$0xf]
    %v125 = vld [vmem:[%s2 + $0x124] sm:$0xf]
    %v126 = vld [vmem:[%s2 + $0x128] sm:$0xf]
    %v127 = vld [vmem:[%s2 + $0x12c] sm:$0xf]
    %v128 = vld [vmem:[%s2 + $0x130] sm:$0xf]
    %v129 = vld [vmem:[%s2 + $0x134] sm:$0xf]
    %v130 = vld [vmem:[%s2 + $0x138] sm:$0xf]
    %v131 = vld [vmem:[%s2 + $0x13c] sm:$0xf]
    %v132 = vld [vmem:[%s2 + $0x140] sm:$0xf]
    %v133 = vld [vmem:[%s2 + $0x144] sm:$0xf]
    %v134 = vld [vmem:[%s2 + $0x148] sm:$0xf]
    %v135 = vld [vmem:[%s2 + $0x14c] sm:$0xf]
    %v136 = vld [vmem:[%s2 + $0x150] sm:$0xf]
    %v137 = vld [vmem:[%s2 + $0x154] sm:$0xf]
    %v138 = vld [vmem:[%s2 + $0x158] sm:$0xf]
    %v139 = vld [vmem:[%s2 + $0x15c] sm:$0xf]
    %v140 = vld [vmem:[%s2 + $0x160] sm:$0xf]
    %v141 = vld [vmem:[%s2 + $0x164] sm:$0xf]
    %v142 = vld [vmem:[%s2 + $0x168] sm:$0xf]
    %v143 = vld [vmem:[%s2 + $0x16c] sm:$0xf]
    %v144 = vld [vmem:[%s2 + $0x170] sm:$0xf]
    %v145 = vld [vmem:[%s2 + $0x174] sm:$0xf]
    %v146 = vld [vmem:[%s2 + $0x178] sm:$0xf]
    %v147 = vld [vmem:[%s2 + $0x17c] sm:$0xf]
    %v148 = vld [vmem:[%s2 + $0x180] sm:$0xf]
    %v149 = vld [vmem:[%s2 + $0x184] sm:$0xf]
    %v150 = vld [vmem:[%s2 + $0x188] sm:$0xf]
    %v151 = vld [vmem:[%s2 + $0x18c] sm:$0xf]
    %v152 = vld [vmem:[%s2 + $0x190] sm:$0xf]
    %v153 = vld [vmem:[%s2 + $0x194] sm:$0xf]
    %v154 = vld [vmem:[%s2 + $0x198] sm:$0xf]
    %v155 = vld [vmem:[%s2 + $0x19c] sm:$0xf]
    %v156 = vld [vmem:[%s2 + $0x1a0] sm:$0xf]
    %v157 = vld [vmem:[%s2 + $0x1a4] sm:$0xf]
    %v158 = vld [vmem:[%s2 + $0x1a8] sm:$0xf]
    %v159 = vld [vmem:[%s2 + $0x1ac] sm:$0xf]
    %v160 = vld [vmem:[%s2 + $0x1b0] sm:$0xf]
    %v161 = vld [vmem:[%s2 + $0x1b4] sm:$0xf]
    %v162 = vld [vmem:[%s2 + $0x1b8] sm:$0xf]
    %v163 = vld [vmem:[%s2 + $0x1bc] sm:$0xf]
    %v164 = vld [vmem:[%s2 + $0x1c0] sm:$0xf]
    %v165 = vld [vmem:[%s2 + $0x1c4] sm:$0xf]
    %v166 = vld [vmem:[%s2 + $0x1c8] sm:$0xf]
    %v167 = vld [vmem:[%s2 + $0x1cc] sm:$0xf]
    %v168 = vld [vmem:[%s2 + $0x1d0] sm:$0xf]
    %v169 = vld [vmem:[%s2 + $0x1d4] sm:$0xf]
    %v170 = vld [vmem:[%s2 + $0x1d8] sm:$0xf]
    %v171 = vld [vmem:[%s2 + $0x1dc] sm:$0xf]
    %v172 = vld [vmem:[%s2 + $0x1e0] sm:$0xf]
    %v173 = vld [vmem:[%s2 + $0x1e4] sm:$0xf]
    %v174 = vld [vmem:[%s2 + $0x1e8] sm:$0xf]
    %v175 = vld [vmem:[%s2 + $0x1ec] sm:$0xf]
    %v176 = vld [vmem:[%s2 + $0x1f0] sm:$0xf]
    %v177 = vld [vmem:[%s2 + $0x1f4] sm:$0xf]
    %v178 = vld [vmem:[%s2 + $0x1f8] sm:$0xf]
    %v179 = vld [vmem:[%s2 + $0x1fc] sm:$0xf]
    %v180 = vld [vmem:[%s3] sm:$0x1]
    %v182 = vperm.slane %v180, 0
    %v312 = vunpack.c.l.b16 %v52
    %v313 = vunpack.c.l.b16 %v53
    %v314 = vunpack.c.l.b16 %v54
    %v315 = vunpack.c.l.b16 %v55
    %v316 = vunpack.c.l.b16 %v56
    %v317 = vunpack.c.l.b16 %v57
    %v318 = vunpack.c.l.b16 %v58
    %v319 = vunpack.c.l.b16 %v59
    %v320 = vunpack.c.l.b16 %v60
    %v321 = vunpack.c.l.b16 %v61
    %v322 = vunpack.c.l.b16 %v62
    %v323 = vunpack.c.l.b16 %v63
    %v324 = vunpack.c.l.b16 %v64
    %v325 = vunpack.c.l.b16 %v65
    %v326 = vunpack.c.l.b16 %v66
    %v327 = vunpack.c.l.b16 %v67
    %v328 = vunpack.c.l.b16 %v68
    %v329 = vunpack.c.l.b16 %v69
    %v330 = vunpack.c.l.b16 %v70
    %v331 = vunpack.c.l.b16 %v71
    %v332 = vunpack.c.l.b16 %v72
    %v333 = vunpack.c.l.b16 %v73
    %v334 = vunpack.c.l.b16 %v74
    %v335 = vunpack.c.l.b16 %v75
    %v336 = vunpack.c.l.b16 %v76
    %v337 = vunpack.c.l.b16 %v77
    %v338 = vunpack.c.l.b16 %v78
    %v339 = vunpack.c.l.b16 %v79
    %v340 = vunpack.c.l.b16 %v80
    %v341 = vunpack.c.l.b16 %v81
    %v342 = vunpack.c.l.b16 %v82
    %v343 = vunpack.c.l.b16 %v83
    %v344 = vunpack.c.l.b16 %v84
    %v345 = vunpack.c.l.b16 %v85
    %v346 = vunpack.c.l.b16 %v86
    %v347 = vunpack.c.l.b16 %v87
    %v348 = vunpack.c.l.b16 %v88
    %v349 = vunpack.c.l.b16 %v89
    %v350 = vunpack.c.l.b16 %v90
    %v351 = vunpack.c.l.b16 %v91
    %v352 = vunpack.c.l.b16 %v92
    %v353 = vunpack.c.l.b16 %v93
    %v354 = vunpack.c.l.b16 %v94
    %v355 = vunpack.c.l.b16 %v95
    %v356 = vunpack.c.l.b16 %v96
    %v357 = vunpack.c.l.b16 %v97
    %v358 = vunpack.c.l.b16 %v98
    %v359 = vunpack.c.l.b16 %v99
    %v360 = vunpack.c.l.b16 %v100
    %v361 = vunpack.c.l.b16 %v101
    %v362 = vunpack.c.l.b16 %v102
    %v363 = vunpack.c.l.b16 %v103
    %v364 = vunpack.c.l.b16 %v104
    %v365 = vunpack.c.l.b16 %v105
    %v366 = vunpack.c.l.b16 %v106
    %v367 = vunpack.c.l.b16 %v107
    %v368 = vunpack.c.l.b16 %v108
    %v369 = vunpack.c.l.b16 %v109
    %v370 = vunpack.c.l.b16 %v110
    %v371 = vunpack.c.l.b16 %v111
    %v372 = vunpack.c.l.b16 %v112
    %v373 = vunpack.c.l.b16 %v113
    %v374 = vunpack.c.l.b16 %v114
    %v375 = vunpack.c.l.b16 %v115
    %v376 = vunpack.c.l.b16 %v116
    %v377 = vunpack.c.l.b16 %v117
    %v378 = vunpack.c.l.b16 %v118
    %v379 = vunpack.c.l.b16 %v119
    %v380 = vunpack.c.l.b16 %v120
    %v381 = vunpack.c.l.b16 %v121
    %v382 = vunpack.c.l.b16 %v122
    %v383 = vunpack.c.l.b16 %v123
    %v384 = vunpack.c.l.b16 %v124
    %v385 = vunpack.c.l.b16 %v125
    %v386 = vunpack.c.l.b16 %v126
    %v387 = vunpack.c.l.b16 %v127
    %v388 = vunpack.c.l.b16 %v128
    %v389 = vunpack.c.l.b16 %v129
    %v390 = vunpack.c.l.b16 %v130
    %v391 = vunpack.c.l.b16 %v131
    %v392 = vunpack.c.l.b16 %v132
    %v393 = vunpack.c.l.b16 %v133
    %v394 = vunpack.c.l.b16 %v134
    %v395 = vunpack.c.l.b16 %v135
    %v396 = vunpack.c.l.b16 %v136
    %v397 = vunpack.c.l.b16 %v137
    %v398 = vunpack.c.l.b16 %v138
    %v399 = vunpack.c.l.b16 %v139
    %v400 = vunpack.c.l.b16 %v140
    %v401 = vunpack.c.l.b16 %v141
    %v402 = vunpack.c.l.b16 %v142
    %v403 = vunpack.c.l.b16 %v143
    %v404 = vunpack.c.l.b16 %v144
    %v405 = vunpack.c.l.b16 %v145
    %v406 = vunpack.c.l.b16 %v146
    %v407 = vunpack.c.l.b16 %v147
    %v408 = vunpack.c.l.b16 %v148
    %v409 = vunpack.c.l.b16 %v149
    %v410 = vunpack.c.l.b16 %v150
    %v411 = vunpack.c.l.b16 %v151
    %v412 = vunpack.c.l.b16 %v152
    %v413 = vunpack.c.l.b16 %v153
    %v414 = vunpack.c.l.b16 %v154
    %v415 = vunpack.c.l.b16 %v155
    %v416 = vunpack.c.l.b16 %v156
    %v417 = vunpack.c.l.b16 %v157
    %v418 = vunpack.c.l.b16 %v158
    %v419 = vunpack.c.l.b16 %v159
    %v420 = vunpack.c.l.b16 %v160
    %v421 = vunpack.c.l.b16 %v161
    %v422 = vunpack.c.l.b16 %v162
    %v423 = vunpack.c.l.b16 %v163
    %v424 = vunpack.c.l.b16 %v164
    %v425 = vunpack.c.l.b16 %v165
    %v426 = vunpack.c.l.b16 %v166
    %v427 = vunpack.c.l.b16 %v167
    %v428 = vunpack.c.l.b16 %v168
    %v429 = vunpack.c.l.b16 %v169
    %v430 = vunpack.c.l.b16 %v170
    %v431 = vunpack.c.l.b16 %v171
    %v432 = vunpack.c.l.b16 %v172
    %v433 = vunpack.c.l.b16 %v173
    %v434 = vunpack.c.l.b16 %v174
    %v435 = vunpack.c.l.b16 %v175
    %v436 = vunpack.c.l.b16 %v176
    %v437 = vunpack.c.l.b16 %v177
    %v438 = vunpack.c.l.b16 %v178
    %v439 = vunpack.c.l.b16 %v179
    %v440 = vpack.c.b16 %v313, %v312
    %v441 = vpack.c.b16 %v315, %v314
    %v442 = vpack.c.b16 %v317, %v316
    %v443 = vpack.c.b16 %v319, %v318
    %v444 = vpack.c.b16 %v321, %v320
    %v445 = vpack.c.b16 %v323, %v322
    %v446 = vpack.c.b16 %v325, %v324
    %v447 = vpack.c.b16 %v327, %v326
    %v448 = vpack.c.b16 %v329, %v328
    %v449 = vpack.c.b16 %v331, %v330
    %v450 = vpack.c.b16 %v333, %v332
    %v451 = vpack.c.b16 %v335, %v334
    %v452 = vpack.c.b16 %v337, %v336
    %v453 = vpack.c.b16 %v339, %v338
    %v454 = vpack.c.b16 %v341, %v340
    %v455 = vpack.c.b16 %v343, %v342
    %v456 = vpack.c.b16 %v345, %v344
    %v457 = vpack.c.b16 %v347, %v346
    %v458 = vpack.c.b16 %v349, %v348
    %v459 = vpack.c.b16 %v351, %v350
    %v460 = vpack.c.b16 %v353, %v352
    %v461 = vpack.c.b16 %v355, %v354
    %v462 = vpack.c.b16 %v357, %v356
    %v463 = vpack.c.b16 %v359, %v358
    %v464 = vpack.c.b16 %v361, %v360
    %v465 = vpack.c.b16 %v363, %v362
    %v466 = vpack.c.b16 %v365, %v364
    %v467 = vpack.c.b16 %v367, %v366
    %v468 = vpack.c.b16 %v369, %v368
    %v469 = vpack.c.b16 %v371, %v370
    %v470 = vpack.c.b16 %v373, %v372
    %v471 = vpack.c.b16 %v375, %v374
    %v472 = vpack.c.b16 %v377, %v376
    %v473 = vpack.c.b16 %v379, %v378
    %v474 = vpack.c.b16 %v381, %v380
    %v475 = vpack.c.b16 %v383, %v382
    %v476 = vpack.c.b16 %v385, %v384
    %v477 = vpack.c.b16 %v387, %v386
    %v478 = vpack.c.b16 %v389, %v388
    %v479 = vpack.c.b16 %v391, %v390
    %v480 = vpack.c.b16 %v393, %v392
    %v481 = vpack.c.b16 %v395, %v394
    %v482 = vpack.c.b16 %v397, %v396
    %v483 = vpack.c.b16 %v399, %v398
    %v484 = vpack.c.b16 %v401, %v400
    %v485 = vpack.c.b16 %v403, %v402
    %v486 = vpack.c.b16 %v405, %v404
    %v487 = vpack.c.b16 %v407, %v406
    %v488 = vpack.c.b16 %v409, %v408
    %v489 = vpack.c.b16 %v411, %v410
    %v490 = vpack.c.b16 %v413, %v412
    %v491 = vpack.c.b16 %v415, %v414
    %v492 = vpack.c.b16 %v417, %v416
    %v493 = vpack.c.b16 %v419, %v418
    %v494 = vpack.c.b16 %v421, %v420
    %v495 = vpack.c.b16 %v423, %v422
    %v496 = vpack.c.b16 %v425, %v424
    %v497 = vpack.c.b16 %v427, %v426
    %v498 = vpack.c.b16 %v429, %v428
    %v499 = vpack.c.b16 %v431, %v430
    %v500 = vpack.c.b16 %v433, %v432
    %v501 = vpack.c.b16 %v435, %v434
    %v502 = vpack.c.b16 %v437, %v436
    %v503 = vpack.c.b16 %v439, %v438
    %568 = vmatpush.bf16.msra.mxu0 %v447
    %569 = vmatpush.bf16.msra.mxu0 %v446
    %570 = vmatpush.bf16.msra.mxu0 %v445
    %571 = vmatpush.bf16.msra.mxu0 %v444
    %572 = vmatpush.bf16.msra.mxu0 %v443
    %573 = vmatpush.bf16.msra.mxu0 %v442
    %574 = vmatpush.bf16.msra.mxu0 %v441
    %575 = vmatpush.bf16.msra.mxu0 %v440
    %576 = vmatmul.bf16.gmra.mxu0 %v44
    %v577 = vpop.f32.mrf.mxu0
    %v578 = vadd.f32 %v182, %v577
    %v579 = vpop.f32.mrf.mxu0
    %580 = vdwg.mxu0
    %581 = vmatpush.bf16.msra.mxu0 %v455
    %582 = vmatpush.bf16.msra.mxu0 %v454
    %583 = vmatpush.bf16.msra.mxu0 %v453
    %584 = vmatpush.bf16.msra.mxu0 %v452
    %585 = vmatpush.bf16.msra.mxu0 %v451
    %586 = vmatpush.bf16.msra.mxu0 %v450
    %587 = vmatpush.bf16.msra.mxu0 %v449
    %588 = vmatpush.bf16.msra.mxu0 %v448
    %589 = vmatmul.bf16.gmra.mxu0 %v45
    %v590 = vpop.f32.mrf.mxu0
    %v591 = vadd.f32 %v578, %v590
    %v592 = vpop.f32.mrf.mxu0
    %593 = vdwg.mxu0
    %594 = vmatpush.bf16.msra.mxu0 %v463
    %595 = vmatpush.bf16.msra.mxu0 %v462
    %596 = vmatpush.bf16.msra.mxu0 %v461
    %597 = vmatpush.bf16.msra.mxu0 %v460
    %598 = vmatpush.bf16.msra.mxu0 %v459
    %599 = vmatpush.bf16.msra.mxu0 %v458
    %600 = vmatpush.bf16.msra.mxu0 %v457
    %601 = vmatpush.bf16.msra.mxu0 %v456
    %602 = vmatmul.bf16.gmra.mxu0 %v46
    %v603 = vpop.f32.mrf.mxu0
    %v604 = vadd.f32 %v591, %v603
    %v605 = vpop.f32.mrf.mxu0
    %606 = vdwg.mxu0
    %607 = vmatpush.bf16.msra.mxu0 %v471
    %608 = vmatpush.bf16.msra.mxu0 %v470
    %609 = vmatpush.bf16.msra.mxu0 %v469
    %610 = vmatpush.bf16.msra.mxu0 %v468
    %611 = vmatpush.bf16.msra.mxu0 %v467
    %612 = vmatpush.bf16.msra.mxu0 %v466
    %613 = vmatpush.bf16.msra.mxu0 %v465
    %614 = vmatpush.bf16.msra.mxu0 %v464
    %615 = vmatmul.bf16.gmra.mxu0 %v47
    %v616 = vpop.f32.mrf.mxu0
    %v617 = vadd.f32 %v604, %v616
    %v618 = vpop.f32.mrf.mxu0
    %619 = vdwg.mxu0
    %620 = vmatpush.bf16.msra.mxu0 %v479
    %621 = vmatpush.bf16.msra.mxu0 %v478
    %622 = vmatpush.bf16.msra.mxu0 %v477
    %623 = vmatpush.bf16.msra.mxu0 %v476
    %624 = vmatpush.bf16.msra.mxu0 %v475
    %625 = vmatpush.bf16.msra.mxu0 %v474
    %626 = vmatpush.bf16.msra.mxu0 %v473
    %627 = vmatpush.bf16.msra.mxu0 %v472
    %628 = vmatmul.bf16.gmra.mxu0 %v48
    %v629 = vpop.f32.mrf.mxu0
    %v630 = vadd.f32 %v617, %v629
    %v631 = vpop.f32.mrf.mxu0
    %632 = vdwg.mxu0
    %633 = vmatpush.bf16.msra.mxu0 %v487
    %634 = vmatpush.bf16.msra.mxu0 %v486
    %635 = vmatpush.bf16.msra.mxu0 %v485
    %636 = vmatpush.bf16.msra.mxu0 %v484
    %637 = vmatpush.bf16.msra.mxu0 %v483
    %638 = vmatpush.bf16.msra.mxu0 %v482
    %639 = vmatpush.bf16.msra.mxu0 %v481
    %640 = vmatpush.bf16.msra.mxu0 %v480
    %641 = vmatmul.bf16.gmra.mxu0 %v49
    %v642 = vpop.f32.mrf.mxu0
    %v643 = vadd.f32 %v630, %v642
    %v644 = vpop.f32.mrf.mxu0
    %645 = vdwg.mxu0
    %646 = vmatpush.bf16.msra.mxu0 %v495
    %647 = vmatpush.bf16.msra.mxu0 %v494
    %648 = vmatpush.bf16.msra.mxu0 %v493
    %649 = vmatpush.bf16.msra.mxu0 %v492
    %650 = vmatpush.bf16.msra.mxu0 %v491
    %651 = vmatpush.bf16.msra.mxu0 %v490
    %652 = vmatpush.bf16.msra.mxu0 %v489
    %653 = vmatpush.bf16.msra.mxu0 %v488
    %654 = vmatmul.bf16.gmra.mxu0 %v50
    %v655 = vpop.f32.mrf.mxu0
    %v656 = vadd.f32 %v643, %v655
    %v657 = vpop.f32.mrf.mxu0
    %658 = vdwg.mxu0
    %659 = vmatpush.bf16.msra.mxu0 %v503
    %660 = vmatpush.bf16.msra.mxu0 %v502
    %661 = vmatpush.bf16.msra.mxu0 %v501
    %662 = vmatpush.bf16.msra.mxu0 %v500
    %663 = vmatpush.bf16.msra.mxu0 %v499
    %664 = vmatpush.bf16.msra.mxu0 %v498
    %665 = vmatpush.bf16.msra.mxu0 %v497
    %666 = vmatpush.bf16.msra.mxu0 %v496
    %667 = vmatmul.bf16.gmra.mxu0 %v51
    %v668 = vpop.f32.mrf.mxu0
    %v669 = vadd.f32 %v656, %v668
    %v670 = vpop.f32.mrf.mxu0
    %671 = vdwg.mxu0
    %v672 = vstv %s35
    %v673 = vmul.f32 %v669, %v672
    %vm674 = vcmask 130048
    %675 = vst.msk [vmem:[#allocation3] sm:$0xff] %vm674, %v673
    // Predicated region
    $region18: #{tpu_custom_call.1} parent=1 // pred_check
      _
    $region19: #{tpu_custom_call.1} parent=1 // pred_check_branch
      %677 = sbr.rel (0) target = $region21
    $region20: #{tpu_custom_call.1} parent=1 // pred_region
      %679 = vsyncadd [#allocation4], 0
      %s681 = sshll.u32 [#allocation3], 4
      %s682 = int_to_ptr.vmem [resolvable:$true] %s681
      %s683 = sshll.u32 %s4, 4
      %s684 = int_to_ptr.hbm [resolvable:$true] %s683
      %686 = dma.vmem_to_hbm [thread:$0]  %s682, 128, %s684, [#allocation4]
    $region21: #{tpu_custom_call.1} parent=1 // pred_fallthru
      _
    // Predicated region
    $region22: #{tpu_custom_call.1} parent=1 // pred_check
      _
    $region23: #{tpu_custom_call.1} parent=1 // pred_check_branch
      %688 = sbr.rel (0) target = $region25
    $region24: #{tpu_custom_call.1} parent=1 // pred_region
      %690 = dma.done [#allocation4], 128
    $region25: #{tpu_custom_call.1} parent=1 // pred_fallthru
      _
    %691 = vsyncpa [#allocation4], 1

</llo_original>
